<compile_context>
chip_gen: v7x
topology: tpu7x:2x2x1
jax: 0.10.0
libtpu: 0.0.40
codegen_flags: <defaults>
</compile_context>

<pallas_src>
import functools

import jax
import jax.numpy as jnp
import numpy as np
from jax.experimental import pallas as pl
from jax.experimental.pallas import tpu as pltpu


# ---------------------------------------------------------------------------
# Kernel
# ---------------------------------------------------------------------------
def _self_attn_pool_kernel(x_ref, wbd_ref, bt_ref, ubd_ref, asum_ref, o_ref, *, inv_e):
    """One batch tile of Bt flows, each flattened to a lane-dense row of N*E lanes.

    x_ref    : [Bt, N*E]   Bt flows; row b is flow b's [N, E] encodings flattened
    wbd_ref  : [N*E, N*E]  kron(I_N, W_m)                 (block-diagonal projection)
    bt_ref   : [1,  N*E]   b_m tiled N times              (kept f32)
    ubd_ref  : [N*E, N*E]  kron(I_N, outer(w_u, 1_E))     -> per-fraction score, replicated
                           across that fraction's E lanes
    asum_ref : [N*E, N*E]  kron(1_{NxN}, I_E)             -> sum over fractions, broadcast
    o_ref    : [Bt, N*E]   out[b, n*E+e] = weights[b,n] * sum_i x[b,i,e]
    """
    f32 = jnp.float32
    w_bd = wbd_ref[...]
    mxu_dtype = w_bd.dtype                     # bf16 (default) or f32 (exact path)
    x_mxu = x_ref[...].astype(mxu_dtype)       # cast at the MXU boundary only

    # Fused projection for all N fractions + whole batch tile: one MXU matmul.
    proj = jnp.dot(x_mxu, w_bd, preferred_element_type=f32)            # [Bt, NE] f32
    m = jnp.tanh(proj + bt_ref[...].astype(f32))                       # f32 VPU/EUP

    # s[b, n*E+f] == score[b, n] for every f in [0, E): chunk-constant along lanes.
    s = jnp.dot(m.astype(mxu_dtype), ubd_ref[...], preferred_element_type=f32)

    # Softmax over the N fractions of each flow.  Each row holds the N scores replicated
    # E times, so a row-wide (lane) max IS the per-flow max and the row-wide sum is
    # E * (per-flow sum).
    s_max = jnp.max(s, axis=1, keepdims=True)                          # [Bt, 1]
    p = jnp.exp(s - s_max)                                             # [Bt, NE]
    denom = jnp.sum(p, axis=1, keepdims=True) * inv_e                  # [Bt, 1]
    w = p * (1.0 / denom)           # exact divide on a [Bt,1] column: perf-neutral, exact

    # Sum over fractions, broadcast back to every fraction's lane chunk.
    x_sum = jnp.dot(x_mxu, asum_ref[...], preferred_element_type=f32)  # [Bt, NE]

    # torch broadcast semantics: out[b, n*E+e] = weights[b, n] * sum_i x[b, i, e]
    o_ref[...] = (w * x_sum).astype(o_ref.dtype)


# ---------------------------------------------------------------------------
# Wrapper
# ---------------------------------------------------------------------------
def _pack_params(weight_m, bias_m, weight_u, n, mxu_dtype):
    """One-time packing of the module parameters into kron selectors (O((N*E)^2) bytes).

    0/1-valued selectors are exact in bf16; W_m / w_u pick up ~1e-3 relative rounding.
    The bias stays f32 (it is added element-wise, outside the MXU).
    """
    e = weight_m.shape[0]
    f32 = jnp.float32
    eye_n = jnp.eye(n, dtype=f32)
    w_bd = jnp.kron(eye_n, jnp.asarray(weight_m, f32)).astype(mxu_dtype)              # [NE,NE]
    u_blk = jnp.asarray(weight_u, f32)[:, None] * jnp.ones((1, e), f32)               # [E, E]
    u_bd = jnp.kron(eye_n, u_blk).astype(mxu_dtype)                                   # [NE,NE]
    a_bd = jnp.kron(jnp.ones((n, n), f32), jnp.eye(e, dtype=f32)).astype(mxu_dtype)   # [NE,NE]
    b_t = jnp.tile(jnp.asarray(bias_m, f32), n).reshape(1, n * e)                     # [1, NE]
    return w_bd, b_t, u_bd, a_bd


def _pick_block_b(b, block_b=None):
    """Batch-tile heuristic: as close to 256-512 rows as divisibility allows, but keep
    >=2 grid steps when B >= 16 so v7x's two TensorCores both get a step
    (dimension_semantics="parallel").  On single-TC v5e/v6e, pass block_b=B explicitly
    for one big step if it fits VMEM."""
    if block_b is not None:
        assert b % block_b == 0, "batch must be divisible by block_b (pad upstream)"
        assert block_b == b or block_b % 8 == 0, "block_b must be a multiple of 8 or == B"
        return block_b
    target = min(b, 512)
    if b >= 16:
        target = min(target, b // 2)          # leave >= 2 grid steps for v7x megacore
    best = None
    for d in range(8, target + 1, 8):         # sublane-aligned divisors of B
        if b % d == 0:
            best = d
    return best if best is not None else b    # fall back to the full batch (legal block)


@functools.partial(jax.jit, static_argnames=("n", "block_b"))
def _pooled_call(x2, w_bd, b_t, u_bd, a_bd, *, n, block_b):
    b, ne = x2.shape
    e = ne // n
    grid = (b // block_b,)

    # Constants: block index never changes -> DMA'd once, kept VMEM-resident, and
    # single-buffered to avoid paying 2x VMEM for data that never changes.
    def const_spec(shape):
        return pl.BlockSpec(shape, lambda i: (0, 0), pipeline_mode=pl.Buffered(1))

    kernel = functools.partial(_self_attn_pool_kernel, inv_e=1.0 / e)
    return pl.pallas_call(
        kernel,
        out_shape=jax.ShapeDtypeStruct((b, ne), x2.dtype),
        grid_spec=pltpu.PrefetchScalarGridSpec(
            num_scalar_prefetch=0,
            grid=grid,
            in_specs=[
                pl.BlockSpec((block_b, ne), lambda i: (i, 0)),  # x tile (pipelined)
                const_spec((ne, ne)),                           # kron(I, W_m)
                const_spec((1, ne)),                            # tiled bias (f32)
                const_spec((ne, ne)),                           # score selector
                const_spec((ne, ne)),                           # fraction-sum selector
            ],
            out_specs=pl.BlockSpec((block_b, ne), lambda i: (i, 0)),
        ),
        compiler_params=pltpu.CompilerParams(
            dimension_semantics=("parallel",),  # batch axis -> both TCs on v7x
        ),
    )(x2, w_bd, b_t, u_bd, a_bd)


class SelfAttentionPooling:
    """JAX/Pallas port of the torch SelfAttentionPooling forward.

    Packs the kron selector constants once (cached per N), then every forward call is a
    single Pallas kernel over lane-dense [B, N*E] rows.  The unused nn.Linear `attention`
    is omitted.
    """

    # TODO(synk): the kron-packed constants are [N*E, N*E]; in bf16 + single-buffering the
    # three of them stay well inside VMEM up to NE ~ 2k, but before scaling past
    # NE ~ 1.1k (32 MiB scoped default) / ~1.6k (v7x 64 MiB physical) switch to a K-tiled
    # contraction: an extra "arbitrary" grid axis over NE-chunks with a VMEM accumulator
    # and pl.when init/finalize, plus vmem_limit_bytes raised with headroom.  If profiling
    # at large B shows the MXU slot binding, also exploit the block-diagonal structure
    # (the w_bd matmul is 87.5% zero flops at N=8) — not worth the layout churn while the
    # kernel is DMA/overhead-bound.
    def __init__(self, weight_m, bias_m, weight_u, *, mxu_dtype=jnp.bfloat16):
        self.weight_m = weight_m
        self.bias_m = bias_m
        self.weight_u = weight_u
        self.mxu_dtype = mxu_dtype
        self._packed_cache = {}

    def _packed(self, n):
        if n not in self._packed_cache:
            self._packed_cache[n] = _pack_params(
                self.weight_m, self.bias_m, self.weight_u, n, self.mxu_dtype
            )
        return self._packed_cache[n]

    def __call__(self, x, *, block_b=None):
        """x: [B, N, E] batch of flows, or [N, E] for a single flow (pre-stacked; no
        host-side list/concat).  Returns the same leading shape with the torch forward's
        per-flow semantics."""
        squeeze = x.ndim == 2
        if squeeze:
            x = x[None]
        b, n, e = x.shape
        packed = self._packed(n)
        bb = _pick_block_b(b, block_b)
        # Free, row-major reshape: each flow becomes one lane-dense row of N*E values.
        out2 = _pooled_call(x.reshape(b, n * e), *packed, n=n, block_b=bb)
        out = out2.reshape(b, n, e)
        return out[0] if squeeze else out


# ---------------------------------------------------------------------------
# Demo / correctness check
# ---------------------------------------------------------------------------
def _reference_f64(x, weight_m, bias_m, weight_u):
    """Pure-numpy float64 mirror of the torch forward (including its [N,1,E]*[N,1]
    broadcast, which yields out[j] = weights[j] * sum_i x[i])."""
    x64 = np.asarray(x, np.float64)
    wm = np.asarray(weight_m, np.float64)
    bm = np.asarray(bias_m, np.float64)
    wu = np.asarray(weight_u, np.float64)
    m = np.tanh(x64 @ wm + bm)                              # [B, N, E]
    scores = m @ wu                                         # [B, N]
    scores = scores - scores.max(axis=-1, keepdims=True)
    w = np.exp(scores)
    w = w / w.sum(axis=-1, keepdims=True)                   # [B, N]
    x_sum = x64.sum(axis=1, keepdims=True)                  # [B, 1, E]
    return w[..., None] * x_sum                             # [B, N, E]


def _round_bf16(a):
    return jnp.asarray(a, jnp.bfloat16).astype(jnp.float32)


if __name__ == "__main__":
    B, N, E = 16, 8, 32  # B flows, N fraction encodings per flow, embed_dim E

    key = jax.random.PRNGKey(0)
    k_x, k_wm, k_bm, k_wu = jax.random.split(key, 4)

    # "torch.randn"-style synthetic parameters (the unused nn.Linear is skipped).
    weight_m = jax.random.normal(k_wm, (E, E), dtype=jnp.float32)
    bias_m = jax.random.normal(k_bm, (E,), dtype=jnp.float32)
    weight_u = jax.random.normal(k_wu, (E,), dtype=jnp.float32)

    # Pre-stacked batch of fraction encodings (each original encoding is [1, E]).
    x = jax.random.normal(k_x, (B, N, E), dtype=jnp.float32)

    # 1) Exact path (f32 MXU operands): validates kernel semantics tightly.
    pool_f32 = SelfAttentionPooling(weight_m, bias_m, weight_u, mxu_dtype=jnp.float32)
    out_f32 = jax.block_until_ready(pool_f32(x))
    ref = _reference_f64(x, weight_m, bias_m, weight_u)
    np.testing.assert_allclose(np.asarray(out_f32, np.float64), ref, rtol=2e-3, atol=2e-3)

    # 2) Default fast path (bf16 MXU operands) against a quantization-matched reference
    #    (x / W_m / w_u pre-rounded to bf16, math in f64).  Remaining tolerance covers the
    #    in-kernel bf16 rounding of the tanh activations before the score matmul, which the
    #    softmax amplifies into a few-percent weight error for these randn-scale logits.
    pool = SelfAttentionPooling(weight_m, bias_m, weight_u)  # bf16 default
    out = jax.block_until_ready(pool(x))
    ref_bf16 = _reference_f64(_round_bf16(x), _round_bf16(weight_m), bias_m,
                              _round_bf16(weight_u))
    np.testing.assert_allclose(np.asarray(out, np.float64), ref_bf16, rtol=3e-2, atol=1e-2)

    print("KERNEL_OK")
</pallas_src>

<mosaic_0001>
module attributes {stable_mosaic.version = 11 : i64} {
  func.func @_self_attn_pool_kernel(%arg0: i32, %arg1: memref<8x256xf32, #tpu.memory_space<vmem>>, %arg2: memref<256x256xf32, #tpu.memory_space<vmem>>, %arg3: memref<1x256xf32, #tpu.memory_space<vmem>>, %arg4: memref<256x256xf32, #tpu.memory_space<vmem>>, %arg5: memref<256x256xf32, #tpu.memory_space<vmem>>, %arg6: memref<8x256xf32, #tpu.memory_space<vmem>>) attributes {dimension_semantics = [#tpu.dimension_semantics<parallel>], iteration_bounds = array<i64: 2>, scalar_prefetch = 0 : i64, scratch_operands = 0 : i64, tpu.core_type = #tpu.core_type<tc>, window_params = [{transform_indices = @transform_0, window_bounds = array<i64: 8, 256>}, {pipeline_mode = #tpu.pipeline_mode<synchronous>, transform_indices = @transform_1, window_bounds = array<i64: 256, 256>}, {pipeline_mode = #tpu.pipeline_mode<synchronous>, transform_indices = @transform_2, window_bounds = array<i64: 1, 256>}, {pipeline_mode = #tpu.pipeline_mode<synchronous>, transform_indices = @transform_3, window_bounds = array<i64: 256, 256>}, {pipeline_mode = #tpu.pipeline_mode<synchronous>, transform_indices = @transform_4, window_bounds = array<i64: 256, 256>}, {transform_indices = @transform_5, window_bounds = array<i64: 8, 256>}]} {
    %c0 = arith.constant 0 : index
    %c0_0 = arith.constant 0 : index
    %0 = vector.load %arg2[%c0, %c0_0] : memref<256x256xf32, #tpu.memory_space<vmem>>, vector<256x256xf32>
    %c0_1 = arith.constant 0 : index
    %c0_2 = arith.constant 0 : index
    %1 = vector.load %arg1[%c0_1, %c0_2] : memref<8x256xf32, #tpu.memory_space<vmem>>, vector<8x256xf32>
    %cst = arith.constant dense<0.000000e+00> : vector<8x256xf32>
    %2 = tpu.matmul %1, %0, %cst {dimension_numbers = #tpu.dot_dimension_numbers<[1], [0], [0], [1], [0, 0, 1, 1], [], []>} : vector<8x256xf32>, vector<256x256xf32>, vector<8x256xf32> -> vector<8x256xf32>
    %c0_3 = arith.constant 0 : index
    %c0_4 = arith.constant 0 : index
    %3 = vector.load %arg3[%c0_3, %c0_4] : memref<1x256xf32, #tpu.memory_space<vmem>>, vector<1x256xf32>
    %4 = vector.broadcast %3 : vector<1x256xf32> to vector<8x256xf32>
    %5 = arith.addf %2, %4 : vector<8x256xf32>
    %6 = math.tanh %5 : vector<8x256xf32>
    %c0_5 = arith.constant 0 : index
    %c0_6 = arith.constant 0 : index
    %7 = vector.load %arg4[%c0_5, %c0_6] : memref<256x256xf32, #tpu.memory_space<vmem>>, vector<256x256xf32>
    %cst_7 = arith.constant dense<0.000000e+00> : vector<8x256xf32>
    %8 = tpu.matmul %6, %7, %cst_7 {dimension_numbers = #tpu.dot_dimension_numbers<[1], [0], [0], [1], [0, 0, 1, 1], [], []>} : vector<8x256xf32>, vector<256x256xf32>, vector<8x256xf32> -> vector<8x256xf32>
    %cst_8 = arith.constant dense<0xFF800000> : vector<8xf32>
    %9 = vector.multi_reduction <maximumf>, %8, %cst_8 [1] : vector<8x256xf32> to vector<8xf32>
    %10 = vector.shape_cast %9 : vector<8xf32> to vector<8x1xf32>
    %11 = vector.broadcast %10 : vector<8x1xf32> to vector<8x256xf32>
    %12 = arith.subf %8, %11 : vector<8x256xf32>
    %13 = math.exp %12 : vector<8x256xf32>
    %cst_9 = arith.constant dense<0.000000e+00> : vector<8xf32>
    %14 = vector.multi_reduction <add>, %13, %cst_9 [1] : vector<8x256xf32> to vector<8xf32>
    %15 = vector.shape_cast %14 : vector<8xf32> to vector<8x1xf32>
    %cst_10 = arith.constant 3.125000e-02 : f32
    %16 = vector.broadcast %cst_10 : f32 to vector<8x1xf32>
    %17 = arith.mulf %15, %16 : vector<8x1xf32>
    %cst_11 = arith.constant 1.000000e+00 : f32
    %18 = vector.broadcast %cst_11 : f32 to vector<8x1xf32>
    %19 = arith.divf %18, %17 : vector<8x1xf32>
    %20 = vector.broadcast %19 : vector<8x1xf32> to vector<8x256xf32>
    %21 = arith.mulf %13, %20 : vector<8x256xf32>
    %c0_12 = arith.constant 0 : index
    %c0_13 = arith.constant 0 : index
    %22 = vector.load %arg5[%c0_12, %c0_13] : memref<256x256xf32, #tpu.memory_space<vmem>>, vector<256x256xf32>
    %cst_14 = arith.constant dense<0.000000e+00> : vector<8x256xf32>
    %23 = tpu.matmul %1, %22, %cst_14 {dimension_numbers = #tpu.dot_dimension_numbers<[1], [0], [0], [1], [0, 0, 1, 1], [], []>} : vector<8x256xf32>, vector<256x256xf32>, vector<8x256xf32> -> vector<8x256xf32>
    %24 = arith.mulf %21, %23 : vector<8x256xf32>
    %c0_15 = arith.constant 0 : index
    %c0_16 = arith.constant 0 : index
    %25 = vector.load %arg6[%c0_15, %c0_16] : memref<8x256xf32, #tpu.memory_space<vmem>>, vector<8x256xf32>
    tpu.vector_store %arg6[%c0_15, %c0_16], %24 {strides = array<i32>} : memref<8x256xf32, #tpu.memory_space<vmem>>, vector<8x256xf32>,
    return
  }
  func.func @transform_0(%arg0: i32) -> (i32, i32) {
    %c0_i32 = arith.constant 0 : i32
    %c0_i32_0 = arith.constant 0 : i32
    return %arg0, %c0_i32 : i32, i32
  }
  func.func @transform_1(%arg0: i32) -> (i32, i32) {
    %c0_i32 = arith.constant 0 : i32
    %c0_i32_0 = arith.constant 0 : i32
    %c0_i32_1 = arith.constant 0 : i32
    return %c0_i32, %c0_i32_0 : i32, i32
  }
  func.func @transform_2(%arg0: i32) -> (i32, i32) {
    %c0_i32 = arith.constant 0 : i32
    %c0_i32_0 = arith.constant 0 : i32
    %c0_i32_1 = arith.constant 0 : i32
    return %c0_i32, %c0_i32_0 : i32, i32
  }
  func.func @transform_3(%arg0: i32) -> (i32, i32) {
    %c0_i32 = arith.constant 0 : i32
    %c0_i32_0 = arith.constant 0 : i32
    %c0_i32_1 = arith.constant 0 : i32
    return %c0_i32, %c0_i32_0 : i32, i32
  }
  func.func @transform_4(%arg0: i32) -> (i32, i32) {
    %c0_i32 = arith.constant 0 : i32
    %c0_i32_0 = arith.constant 0 : i32
    %c0_i32_1 = arith.constant 0 : i32
    return %c0_i32, %c0_i32_0 : i32, i32
  }
  func.func @transform_5(%arg0: i32) -> (i32, i32) {
    %c0_i32 = arith.constant 0 : i32
    %c0_i32_0 = arith.constant 0 : i32
    return %arg0, %c0_i32 : i32, i32
  }
}

</mosaic_0001>

<llo_original>
// kernel: _pooled_call.1
$region0: #{_pooled_call.1}
  #allocation0 [shape = 'u32[]', space=smem, size = 0x4, offset = 0x4, fixed_abs, tag = 'smem constant byte address 0x4 - core index']
  #allocation1 [shape = 'u32[144,128]{1,0:T(1,128)}', space=vmem, size = 0x12000, scoped, tag = 'internal scratch']
  %s0 = inlined_call_operand.hbm [shape: f32[16,256], index: 0, kind: input, shape index: {}]
  %s1 = inlined_call_operand.hbm [shape: f32[256,256], index: 1, kind: input, shape index: {}]
  %s2 = inlined_call_operand.vmem [shape: f32[1,256], index: 2, kind: input, shape index: {}]
  %s3 = inlined_call_operand.hbm [shape: f32[256,256], index: 3, kind: input, shape index: {}]
  %s4 = inlined_call_operand.hbm [shape: f32[256,256], index: 4, kind: input, shape index: {}]
  %s5 = inlined_call_operand.hbm [shape: f32[16,256], index: 5, kind: output, shape index: {}]
  %s6 = sld [smem:[#allocation0]]
  $region69: #{_pooled_call.1} parent=0
    _
  %s8 = ssub.s32 1, %s6
  %s9 = scalar_select 0, %s8, %s6
  $region1: #{_pooled_call.1} parent=0
    #allocation2 [shape = 'u8[16384]{0}', space=vmem, size = 0x4000, scoped, tag = 'input window, operand 0']
    #allocation3 [shape = 's32[2]{0}', space=sflag, size = 0x8, scoped, tag = 'scoped memory for _pooled_call.1']
    #allocation4 [shape = 's32[2]{0}', space=sflag, size = 0x8, scoped, tag = 'scoped memory for _pooled_call.1']
    #allocation5 [shape = 'u8[262144]{0}', space=vmem, size = 0x40000, scoped, tag = 'input window, operand 1, single buffered']
    #allocation6 [shape = 's32[1]{0}', space=sflag, size = 0x4, scoped, tag = 'scoped memory for _pooled_call.1']
    #allocation7 [shape = 'u8[262144]{0}', space=vmem, size = 0x40000, scoped, tag = 'input window, operand 3, single buffered']
    #allocation8 [shape = 'u8[262144]{0}', space=vmem, size = 0x40000, scoped, tag = 'input window, operand 4, single buffered']
    #allocation9 [shape = 's32[1]{0}', space=sflag, size = 0x4, scoped, tag = 'scoped memory for _pooled_call.1']
    #allocation10 [shape = 'u8[16384]{0}', space=vmem, size = 0x4000, scoped, tag = 'output window, operand 0']
    %10 = vsyncpa [#allocation3], 0
    %s11 = scalar_lea.sflag [#allocation3], 1
    %12 = vsyncpa %s11, 0
    %13 = vsyncpa [#allocation6], 0
    %14 = vsyncpa [#allocation9], 0
    %15 = vsyncpa [#allocation4], 0
    %s16 = scalar_lea.sflag [#allocation4], 1
    %17 = vsyncpa %s16, 0
    loop: start=0, step=1, limit=4
    $region2: #{_pooled_call.1} parent=1 // loop_pre_header
      _
    $region3: #{_pooled_call.1} parent=1 // loop_header
      %s19 = sphi 0, %s23
      %p20 = scmp.ge.s32.totalorder %s19, 4
      %s29 = sphi 0, %s31
      %s32 = sphi 0, %s29
      %s33 = sphi 0, %s32
      %s49 = sphi 0, %s33
      %s53 = sphi 0, %s53
      %s55 = sphi 0, %s53
      %s56 = sphi 0, %s55
      %s70 = sphi 0, %s56
      %s74 = sphi 0, %s74
      %s76 = sphi 0, %s74
      %s77 = sphi 0, %s76
      %s91 = sphi 0, %s77
      %s95 = sphi 0, %s95
      %s97 = sphi 0, %s95
      %s98 = sphi 0, %s97
      %s112 = sphi 0, %s98
      %s116 = sphi 0, %s116
      %s118 = sphi 0, %s116
      %s119 = sphi 0, %s118
      %s133 = sphi 0, %s119
      %s139 = sphi 0, %s141
      %s142 = sphi 0, %s139
      %s143 = sphi 0, %s142
      %s159 = sphi 0, %s143
    $region4: #{_pooled_call.1} parent=1 // loop_header_branch
      %22 = sbr.rel (%p20) target = $region8
    $region5: #{_pooled_call.1} parent=1 // loop_body
      %s24 = ssub.s32 %s19, 1
      %s25 = ssub.s32 %s19, 2
      %s26 = sadd.s32 %s19, 1
      %s27 = ssub.s32 %s19, %s26
      %p28 = scmp.eq.s32.totalorder %s27, 0
      %s30 = sadd.s32 %s29, 1
      %s31 = scalar_select %p28, %s29, %s30
      %p34 = pneg %p28
      %p35 = scmp.eq.s32.totalorder %s19, 1
      %p36 = por %p34, %p35
      %p37 = scmp.ne.s32.totalorder %s29, %s32
      %p38 = scmp.eq.s32.totalorder %s19, 0
      %p39 = por %p37, %p38
      %p40 = scmp.ne.s32.totalorder %s29, %s32
      %p41 = scmp.eq.s32.totalorder %s24, 1
      %p42 = por %p40, %p41
      %p43 = scmp.ne.s32.totalorder %s32, %s33
      %p44 = scmp.eq.s32.totalorder %s24, 0
      %p45 = por %p43, %p44
      %p46 = scmp.ne.s32.totalorder %s32, %s33
      %p47 = scmp.eq.s32.totalorder %s25, 1
      %p48 = por %p46, %p47
      %p50 = scmp.ne.s32.totalorder %s33, %s49
      %p51 = scmp.eq.s32.totalorder %s25, 0
      %p52 = por %p50, %p51
      %s54 = sadd.s32 %s53, 1
      %p57 = scmp.eq.s32.totalorder %s19, 1
      %p58 = scmp.ne.s32.totalorder %s53, %s55
      %p59 = scmp.eq.s32.totalorder %s19, 0
      %p60 = por %p58, %p59
      %p61 = scmp.ne.s32.totalorder %s53, %s55
      %p62 = scmp.eq.s32.totalorder %s24, 1
      %p63 = por %p61, %p62
      %p64 = scmp.ne.s32.totalorder %s55, %s56
      %p65 = scmp.eq.s32.totalorder %s24, 0
      %p66 = por %p64, %p65
      %p67 = scmp.ne.s32.totalorder %s55, %s56
      %p68 = scmp.eq.s32.totalorder %s25, 1
      %p69 = por %p67, %p68
      %p71 = scmp.ne.s32.totalorder %s56, %s70
      %p72 = scmp.eq.s32.totalorder %s25, 0
      %p73 = por %p71, %p72
      %s75 = sadd.s32 %s74, 1
      %p78 = scmp.eq.s32.totalorder %s19, 1
      %p79 = scmp.ne.s32.totalorder %s74, %s76
      %p80 = scmp.eq.s32.totalorder %s19, 0
      %p81 = por %p79, %p80
      %p82 = scmp.ne.s32.totalorder %s74, %s76
      %p83 = scmp.eq.s32.totalorder %s24, 1
      %p84 = por %p82, %p83
      %p85 = scmp.ne.s32.totalorder %s76, %s77
      %p86 = scmp.eq.s32.totalorder %s24, 0
      %p87 = por %p85, %p86
      %p88 = scmp.ne.s32.totalorder %s76, %s77
      %p89 = scmp.eq.s32.totalorder %s25, 1
      %p90 = por %p88, %p89
      %p92 = scmp.ne.s32.totalorder %s77, %s91
      %p93 = scmp.eq.s32.totalorder %s25, 0
      %p94 = por %p92, %p93
      %s96 = sadd.s32 %s95, 1
      %p99 = scmp.eq.s32.totalorder %s19, 1
      %p100 = scmp.ne.s32.totalorder %s95, %s97
      %p101 = scmp.eq.s32.totalorder %s19, 0
      %p102 = por %p100, %p101
      %p103 = scmp.ne.s32.totalorder %s95, %s97
      %p104 = scmp.eq.s32.totalorder %s24, 1
      %p105 = por %p103, %p104
      %p106 = scmp.ne.s32.totalorder %s97, %s98
      %p107 = scmp.eq.s32.totalorder %s24, 0
      %p108 = por %p106, %p107
      %p109 = scmp.ne.s32.totalorder %s97, %s98
      %p110 = scmp.eq.s32.totalorder %s25, 1
      %p111 = por %p109, %p110
      %p113 = scmp.ne.s32.totalorder %s98, %s112
      %p114 = scmp.eq.s32.totalorder %s25, 0
      %p115 = por %p113, %p114
      %s117 = sadd.s32 %s116, 1
      %p120 = scmp.eq.s32.totalorder %s19, 1
      %p121 = scmp.ne.s32.totalorder %s116, %s118
      %p122 = scmp.eq.s32.totalorder %s19, 0
      %p123 = por %p121, %p122
      %p124 = scmp.ne.s32.totalorder %s116, %s118
      %p125 = scmp.eq.s32.totalorder %s24, 1
      %p126 = por %p124, %p125
      %p127 = scmp.ne.s32.totalorder %s118, %s119
      %p128 = scmp.eq.s32.totalorder %s24, 0
      %p129 = por %p127, %p128
      %p130 = scmp.ne.s32.totalorder %s118, %s119
      %p131 = scmp.eq.s32.totalorder %s25, 1
      %p132 = por %p130, %p131
      %p134 = scmp.ne.s32.totalorder %s119, %s133
      %p135 = scmp.eq.s32.totalorder %s25, 0
      %p136 = por %p134, %p135
      %s137 = ssub.s32 %s19, %s26
      %p138 = scmp.eq.s32.totalorder %s137, 0
      %s140 = sadd.s32 %s139, 1
      %s141 = scalar_select %p138, %s139, %s140
      %p144 = pneg %p138
      %p145 = scmp.eq.s32.totalorder %s19, 1
      %p146 = por %p144, %p145
      %p147 = scmp.ne.s32.totalorder %s139, %s142
      %p148 = scmp.eq.s32.totalorder %s19, 0
      %p149 = por %p147, %p148
      %p150 = scmp.ne.s32.totalorder %s139, %s142
      %p151 = scmp.eq.s32.totalorder %s24, 1
      %p152 = por %p150, %p151
      %p153 = scmp.ne.s32.totalorder %s142, %s143
      %p154 = scmp.eq.s32.totalorder %s24, 0
      %p155 = por %p153, %p154
      %p156 = scmp.ne.s32.totalorder %s142, %s143
      %p157 = scmp.eq.s32.totalorder %s25, 1
      %p158 = por %p156, %p157
      %p160 = scmp.ne.s32.totalorder %s143, %s159
      %p161 = scmp.eq.s32.totalorder %s25, 0
      %p162 = por %p160, %p161
      %p163 = scmp.le.s32.totalorder 1, %s19
      %p164 = scmp.lt.s32.totalorder %s19, 3
      %p165 = pnand %p163, %p164
      %p166 = pneg %p165
      // Predicated region
      $region9: #{_pooled_call.1} parent=5 // pred_check
        _
      $region10: #{_pooled_call.1} parent=5 // pred_check_branch
        %168 = sbr.rel (%p165) target = $region12
      $region11: #{_pooled_call.1} parent=5 // pred_region
        %s169 = ssub.s32 %s19, 1
        // Predicated region
        $region13: #{_pooled_call.1} parent=11 // pred_check
          %p170 = pneg %p66
        $region14: #{_pooled_call.1} parent=11 // pred_check_branch
          %172 = sbr.rel (%p170) target = $region16
        $region15: #{_pooled_call.1} parent=11 // pred_region
          %s174 = ssub.s32 8192, 8192
          %175 = vsyncadd [#allocation6], %s174
          %s176 = sshll.u32 [#allocation5], 4
          %s177 = int_to_ptr.vmem [resolvable:$true] %s176
          %182 = dma.hbm_to_vmem [thread:$0]  %s1, 8192, %s177, [#allocation6], 256, 256, 16
        $region16: #{_pooled_call.1} parent=11 // pred_fallthru
          _
        // Predicated region
        $region17: #{_pooled_call.1} parent=11 // pred_check
          %p183 = pneg %p87
        $region18: #{_pooled_call.1} parent=11 // pred_check_branch
          %185 = sbr.rel (%p183) target = $region20
        $region19: #{_pooled_call.1} parent=11 // pred_region
          _
        $region20: #{_pooled_call.1} parent=11 // pred_fallthru
          _
        // Predicated region
        $region21: #{_pooled_call.1} parent=11 // pred_check
          %p186 = pneg %p108
        $region22: #{_pooled_call.1} parent=11 // pred_check_branch
          %188 = sbr.rel (%p186) target = $region24
        $region23: #{_pooled_call.1} parent=11 // pred_region
          %s190 = ssub.s32 8192, 8192
          %191 = vsyncadd [#allocation6], %s190
          %s192 = sshll.u32 [#allocation7], 4
          %s193 = int_to_ptr.vmem [resolvable:$true] %s192
          %198 = dma.hbm_to_vmem [thread:$0]  %s3, 8192, %s193, [#allocation6], 256, 256, 16
        $region24: #{_pooled_call.1} parent=11 // pred_fallthru
          _
        // Predicated region
        $region25: #{_pooled_call.1} parent=11 // pred_check
          %p199 = pneg %p129
        $region26: #{_pooled_call.1} parent=11 // pred_check_branch
          %201 = sbr.rel (%p199) target = $region28
        $region27: #{_pooled_call.1} parent=11 // pred_region
          %s203 = ssub.s32 8192, 8192
          %204 = vsyncadd [#allocation9], %s203
          %s205 = sshll.u32 [#allocation8], 4
          %s206 = int_to_ptr.vmem [resolvable:$true] %s205
          %211 = dma.hbm_to_vmem [thread:$0]  %s4, 8192, %s206, [#allocation9], 256, 256, 16
        $region28: #{_pooled_call.1} parent=11 // pred_fallthru
          _
      $region12: #{_pooled_call.1} parent=5 // pred_fallthru
        _
      %p212 = scmp.lt.s32.totalorder %s19, 2
      // Predicated region
      $region29: #{_pooled_call.1} parent=5 // pred_check
        %p213 = pneg %p212
      $region30: #{_pooled_call.1} parent=5 // pred_check_branch
        %215 = sbr.rel (%p213) target = $region32
      $region31: #{_pooled_call.1} parent=5 // pred_region
        // Predicated region
        $region33: #{_pooled_call.1} parent=31 // pred_check
          %p216 = pneg %p39
        $region34: #{_pooled_call.1} parent=31 // pred_check_branch
          %218 = sbr.rel (%p216) target = $region36
        $region35: #{_pooled_call.1} parent=31 // pred_region
          %s219 = sand.u32 %s29, 1
          %s220 = scalar_lea.sflag [#allocation3], %s219
          %s221 = sand.u32 %s29, 1
          %s222 = smul.addr %s221, 16
          %s223 = scalar_lea.vmem [#allocation2], %s222
          %s225 = ssub.s32 256, 256
          %226 = vsyncadd %s220, %s225
          %s227 = smul.addr %s19, 2
          %s228 = smul.addr %s227, 128
          %s229 = scalar_lea.hbm %s0, %s228
          %s231 = sshll.u32 %s223, 4
          %s232 = int_to_ptr.vmem [resolvable:$true] %s231
          %234 = dma.hbm_to_vmem [thread:$0]  %s229, 256, %s232, %s220
        $region36: #{_pooled_call.1} parent=31 // pred_fallthru
          _
      $region32: #{_pooled_call.1} parent=5 // pred_fallthru
        _
      %p235 = scmp.le.s32.totalorder 1, %s19
      %p236 = scmp.lt.s32.totalorder %s19, 3
      %p237 = pnand %p235, %p236
      %p238 = pneg %p237
      // Predicated region
      $region37: #{_pooled_call.1} parent=5 // pred_check
        _
      $region38: #{_pooled_call.1} parent=5 // pred_check_branch
        %240 = sbr.rel (%p237) target = $region40
      $region39: #{_pooled_call.1} parent=5 // pred_region
        %s241 = ssub.s32 %s19, 1
        %s242 = sand.u32 %s32, 1
        %s243 = scalar_lea.sflag [#allocation3], %s242
        %s244 = sand.u32 %s32, 1
        %s245 = smul.addr %s244, 16
        %s246 = scalar_lea.vmem [#allocation2], %s245
        // Predicated region
        $region41: #{_pooled_call.1} parent=39 // pred_check
          %p247 = pneg %p45
        $region42: #{_pooled_call.1} parent=39 // pred_check_branch
          %249 = sbr.rel (%p247) target = $region44
        $region43: #{_pooled_call.1} parent=39 // pred_region
          %250 = dma.done %s243, 256
        $region44: #{_pooled_call.1} parent=39 // pred_fallthru
          _
        // Predicated region
        $region45: #{_pooled_call.1} parent=39 // pred_check
          %p251 = pneg %p66
        $region46: #{_pooled_call.1} parent=39 // pred_check_branch
          %253 = sbr.rel (%p251) target = $region48
        $region47: #{_pooled_call.1} parent=39 // pred_region
          %254 = dma.done [#allocation6], 8192
        $region48: #{_pooled_call.1} parent=39 // pred_fallthru
          _
        // Predicated region
        $region49: #{_pooled_call.1} parent=39 // pred_check
          %p255 = pneg %p108
        $region50: #{_pooled_call.1} parent=39 // pred_check_branch
          %257 = sbr.rel (%p255) target = $region52
        $region51: #{_pooled_call.1} parent=39 // pred_region
          %258 = dma.done [#allocation6], 8192
        $region52: #{_pooled_call.1} parent=39 // pred_fallthru
          _
        // Predicated region
        $region53: #{_pooled_call.1} parent=39 // pred_check
          %p259 = pneg %p129
        $region54: #{_pooled_call.1} parent=39 // pred_check_branch
          %261 = sbr.rel (%p259) target = $region56
        $region55: #{_pooled_call.1} parent=39 // pred_region
          %262 = dma.done [#allocation9], 8192
        $region56: #{_pooled_call.1} parent=39 // pred_fallthru
          _
        %s263 = sand.u32 %s32, 1
        %s264 = scalar_lea.sflag [#allocation3], %s263
        %s265 = sand.u32 %s32, 1
        %s266 = smul.addr %s265, 16
        %s267 = scalar_lea.vmem [#allocation2], %s266
        %p268 = pneg %p45
        %p269 = pneg %p42
        %p270 = pneg %p66
        %p271 = pneg %p63
        %p272 = pneg %p87
        %p273 = pneg %p84
        %p274 = pneg %p108
        %p275 = pneg %p105
        %p276 = pneg %p129
        %p277 = pneg %p126
        %p278 = pneg %p155
        %p279 = pneg %p152
        %s280 = sand.u32 %s142, 1
        %s281 = scalar_lea.sflag [#allocation4], %s280
        %s282 = sand.u32 %s142, 1
        %s283 = smul.addr %s282, 16
        %s284 = scalar_lea.vmem [#allocation10], %s283
        %v285 = vld [vmem:[#allocation5] sm:$0xff]
        %v286 = vld [vmem:[#allocation5 + $0x8] sm:$0xff]
        %v287 = vld [vmem:[#allocation5 + $0x10] sm:$0xff]
        %v288 = vld [vmem:[#allocation5 + $0x18] sm:$0xff]
        %v289 = vld [vmem:[#allocation5 + $0x20] sm:$0xff]
        %v290 = vld [vmem:[#allocation5 + $0x28] sm:$0xff]
        %v291 = vld [vmem:[#allocation5 + $0x30] sm:$0xff]
        %v292 = vld [vmem:[#allocation5 + $0x38] sm:$0xff]
        %v293 = vld [vmem:[#allocation5 + $0x40] sm:$0xff]
        %v294 = vld [vmem:[#allocation5 + $0x48] sm:$0xff]
        %v295 = vld [vmem:[#allocation5 + $0x50] sm:$0xff]
        %v296 = vld [vmem:[#allocation5 + $0x58] sm:$0xff]
        %v297 = vld [vmem:[#allocation5 + $0x60] sm:$0xff]
        %v298 = vld [vmem:[#allocation5 + $0x68] sm:$0xff]
        %v299 = vld [vmem:[#allocation5 + $0x70] sm:$0xff]
        %v300 = vld [vmem:[#allocation5 + $0x78] sm:$0xff]
        %v301 = vld [vmem:[#allocation5 + $0x80] sm:$0xff]
        %v302 = vld [vmem:[#allocation5 + $0x88] sm:$0xff]
        %v303 = vld [vmem:[#allocation5 + $0x90] sm:$0xff]
        %v304 = vld [vmem:[#allocation5 + $0x98] sm:$0xff]
        %v305 = vld [vmem:[#allocation5 + $0xa0] sm:$0xff]
        %v306 = vld [vmem:[#allocation5 + $0xa8] sm:$0xff]
        %v307 = vld [vmem:[#allocation5 + $0xb0] sm:$0xff]
        %v308 = vld [vmem:[#allocation5 + $0xb8] sm:$0xff]
        %v309 = vld [vmem:[#allocation5 + $0xc0] sm:$0xff]
        %v310 = vld [vmem:[#allocation5 + $0xc8] sm:$0xff]
        %v311 = vld [vmem:[#allocation5 + $0xd0] sm:$0xff]
        %v312 = vld [vmem:[#allocation5 + $0xd8] sm:$0xff]
        %v313 = vld [vmem:[#allocation5 + $0xe0] sm:$0xff]
        %v314 = vld [vmem:[#allocation5 + $0xe8] sm:$0xff]
        %v315 = vld [vmem:[#allocation5 + $0xf0] sm:$0xff]
        %v316 = vld [vmem:[#allocation5 + $0xf8] sm:$0xff]
        %v317 = vld [vmem:[#allocation5 + $0x100] sm:$0xff]
        %v318 = vld [vmem:[#allocation5 + $0x108] sm:$0xff]
        %v319 = vld [vmem:[#allocation5 + $0x110] sm:$0xff]
        %v320 = vld [vmem:[#allocation5 + $0x118] sm:$0xff]
        %v321 = vld [vmem:[#allocation5 + $0x120] sm:$0xff]
        %v322 = vld [vmem:[#allocation5 + $0x128] sm:$0xff]
        %v323 = vld [vmem:[#allocation5 + $0x130] sm:$0xff]
        %v324 = vld [vmem:[#allocation5 + $0x138] sm:$0xff]
        %v325 = vld [vmem:[#allocation5 + $0x140] sm:$0xff]
        %v326 = vld [vmem:[#allocation5 + $0x148] sm:$0xff]
        %v327 = vld [vmem:[#allocation5 + $0x150] sm:$0xff]
        %v328 = vld [vmem:[#allocation5 + $0x158] sm:$0xff]
        %v329 = vld [vmem:[#allocation5 + $0x160] sm:$0xff]
        %v330 = vld [vmem:[#allocation5 + $0x168] sm:$0xff]
        %v331 = vld [vmem:[#allocation5 + $0x170] sm:$0xff]
        %v332 = vld [vmem:[#allocation5 + $0x178] sm:$0xff]
        %v333 = vld [vmem:[#allocation5 + $0x180] sm:$0xff]
        %v334 = vld [vmem:[#allocation5 + $0x188] sm:$0xff]
        %v335 = vld [vmem:[#allocation5 + $0x190] sm:$0xff]
        %v336 = vld [vmem:[#allocation5 + $0x198] sm:$0xff]
        %v337 = vld [vmem:[#allocation5 + $0x1a0] sm:$0xff]
        %v338 = vld [vmem:[#allocation5 + $0x1a8] sm:$0xff]
        %v339 = vld [vmem:[#allocation5 + $0x1b0] sm:$0xff]
        %v340 = vld [vmem:[#allocation5 + $0x1b8] sm:$0xff]
        %v341 = vld [vmem:[#allocation5 + $0x1c0] sm:$0xff]
        %v342 = vld [vmem:[#allocation5 + $0x1c8] sm:$0xff]
        %v343 = vld [vmem:[#allocation5 + $0x1d0] sm:$0xff]
        %v344 = vld [vmem:[#allocation5 + $0x1d8] sm:$0xff]
        %v345 = vld [vmem:[#allocation5 + $0x1e0] sm:$0xff]
        %v346 = vld [vmem:[#allocation5 + $0x1e8] sm:$0xff]
        %v347 = vld [vmem:[#allocation5 + $0x1f0] sm:$0xff]
        %v348 = vld [vmem:[#allocation5 + $0x1f8] sm:$0xff]
        %v349 = vld [vmem:[%s246] sm:$0xff]
        %v350 = vld [vmem:[%s246 + $0x8] sm:$0xff]
        %v351 = vld [vmem:[%s2] sm:$0x3]
        %v353 = vlaneseq
        %v354 = vshrl.u32 %v353, 7
        %v355 = vsub.s32 0, %v354
        %v356 = vrot.slane %v351, %v355
        %v357 = vlaneseq
        %v358 = vshrl.u32 %v357, 7
        %v359 = vsub.s32 1, %v358
        %v360 = vrot.slane %v351, %v359
        %363 = vmatprep.subr.mxu0 %v286
        %364 = vmatpush1.msra.mxu0 %v285
        %365 = vmatprep.subr.mxu0 %v288
        %366 = vmatpush1.msra.mxu0 %v287
        %367 = vmatprep.subr.mxu0 %v290
        %368 = vmatpush1.msra.mxu0 %v289
        %369 = vmatprep.subr.mxu0 %v292
        %370 = vmatpush1.msra.mxu0 %v291
        %371 = vmatprep.subr.mxu0 %v294
        %372 = vmatpush1.msra.mxu0 %v293
        %373 = vmatprep.subr.mxu0 %v296
        %374 = vmatpush1.msra.mxu0 %v295
        %375 = vmatprep.subr.mxu0 %v298
        %376 = vmatpush1.msra.mxu0 %v297
        %377 = vmatprep.subr.mxu0 %v300
        %378 = vmatpush1.msra.mxu0 %v299
        %379 = vmatprep.subr.mxu0 %v302
        %380 = vmatpush1.msra.mxu0 %v301
        %381 = vmatprep.subr.mxu0 %v304
        %382 = vmatpush1.msra.mxu0 %v303
        %383 = vmatprep.subr.mxu0 %v306
        %384 = vmatpush1.msra.mxu0 %v305
        %385 = vmatprep.subr.mxu0 %v308
        %386 = vmatpush1.msra.mxu0 %v307
        %387 = vmatprep.subr.mxu0 %v310
        %388 = vmatpush1.msra.mxu0 %v309
        %389 = vmatprep.subr.mxu0 %v312
        %390 = vmatpush1.msra.mxu0 %v311
        %391 = vmatprep.subr.mxu0 %v314
        %392 = vmatpush1.msra.mxu0 %v313
        %393 = vmatprep.subr.mxu0 %v316
        %394 = vmatpush1.msra.mxu0 %v315
        %395 = vmatprep.subr.mxu0 %v318
        %396 = vmatpush1.msra.mxu0 %v317
        %397 = vmatprep.subr.mxu0 %v320
        %398 = vmatpush1.msra.mxu0 %v319
        %399 = vmatprep.subr.mxu0 %v322
        %400 = vmatpush1.msra.mxu0 %v321
        %401 = vmatprep.subr.mxu0 %v324
        %402 = vmatpush1.msra.mxu0 %v323
        %403 = vmatprep.subr.mxu0 %v326
        %404 = vmatpush1.msra.mxu0 %v325
        %405 = vmatprep.subr.mxu0 %v328
        %406 = vmatpush1.msra.mxu0 %v327
        %407 = vmatprep.subr.mxu0 %v330
        %408 = vmatpush1.msra.mxu0 %v329
        %409 = vmatprep.subr.mxu0 %v332
        %410 = vmatpush1.msra.mxu0 %v331
        %411 = vmatprep.subr.mxu0 %v334
        %412 = vmatpush1.msra.mxu0 %v333
        %413 = vmatprep.subr.mxu0 %v336
        %414 = vmatpush1.msra.mxu0 %v335
        %415 = vmatprep.subr.mxu0 %v338
        %416 = vmatpush1.msra.mxu0 %v337
        %417 = vmatprep.subr.mxu0 %v340
        %418 = vmatpush1.msra.mxu0 %v339
        %419 = vmatprep.subr.mxu0 %v342
        %420 = vmatpush1.msra.mxu0 %v341
        %421 = vmatprep.subr.mxu0 %v344
        %422 = vmatpush1.msra.mxu0 %v343
        %423 = vmatprep.subr.mxu0 %v346
        %424 = vmatpush1.msra.mxu0 %v345
        %425 = vmatprep.subr.mxu0 %v348
        %426 = vmatpush1.msra.mxu0 %v347
        %427 = vmatprep.mubr.f32.mxu0 %v350
        %428 = vmatmul.mubr.f32.gmra.mrb[0].mxu0 %v349
        %v429 = vpop.f32.mrb[0].mxu0
        %v430 = vadd.f32 %v356, %v429
        %v431 = vpop.f32.mrb[0].mxu0
        %v432 = vadd.f32 %v360, %v431
        %433 = vdwg.mxu0
        %v434 = vtanh.pop %v430
        %v435 = vtanh.pop %v432
        %v436 = vld [vmem:[#allocation7] sm:$0xff]
        %v437 = vld [vmem:[#allocation7 + $0x8] sm:$0xff]
        %v438 = vld [vmem:[#allocation7 + $0x10] sm:$0xff]
        %v439 = vld [vmem:[#allocation7 + $0x18] sm:$0xff]
        %v440 = vld [vmem:[#allocation7 + $0x20] sm:$0xff]
        %v441 = vld [vmem:[#allocation7 + $0x28] sm:$0xff]
        %v442 = vld [vmem:[#allocation7 + $0x30] sm:$0xff]
        %v443 = vld [vmem:[#allocation7 + $0x38] sm:$0xff]
        %v444 = vld [vmem:[#allocation7 + $0x40] sm:$0xff]
        %v445 = vld [vmem:[#allocation7 + $0x48] sm:$0xff]
        %v446 = vld [vmem:[#allocation7 + $0x50] sm:$0xff]
        %v447 = vld [vmem:[#allocation7 + $0x58] sm:$0xff]
        %v448 = vld [vmem:[#allocation7 + $0x60] sm:$0xff]
        %v449 = vld [vmem:[#allocation7 + $0x68] sm:$0xff]
        %v450 = vld [vmem:[#allocation7 + $0x70] sm:$0xff]
        %v451 = vld [vmem:[#allocation7 + $0x78] sm:$0xff]
        %v452 = vld [vmem:[#allocation7 + $0x80] sm:$0xff]
        %v453 = vld [vmem:[#allocation7 + $0x88] sm:$0xff]
        %v454 = vld [vmem:[#allocation7 + $0x90] sm:$0xff]
        %v455 = vld [vmem:[#allocation7 + $0x98] sm:$0xff]
        %v456 = vld [vmem:[#allocation7 + $0xa0] sm:$0xff]
        %v457 = vld [vmem:[#allocation7 + $0xa8] sm:$0xff]
        %v458 = vld [vmem:[#allocation7 + $0xb0] sm:$0xff]
        %v459 = vld [vmem:[#allocation7 + $0xb8] sm:$0xff]
        %v460 = vld [vmem:[#allocation7 + $0xc0] sm:$0xff]
        %v461 = vld [vmem:[#allocation7 + $0xc8] sm:$0xff]
        %v462 = vld [vmem:[#allocation7 + $0xd0] sm:$0xff]
        %v463 = vld [vmem:[#allocation7 + $0xd8] sm:$0xff]
        %v464 = vld [vmem:[#allocation7 + $0xe0] sm:$0xff]
        %v465 = vld [vmem:[#allocation7 + $0xe8] sm:$0xff]
        %v466 = vld [vmem:[#allocation7 + $0xf0] sm:$0xff]
        %v467 = vld [vmem:[#allocation7 + $0xf8] sm:$0xff]
        %v468 = vld [vmem:[#allocation7 + $0x100] sm:$0xff]
        %v469 = vld [vmem:[#allocation7 + $0x108] sm:$0xff]
        %v470 = vld [vmem:[#allocation7 + $0x110] sm:$0xff]
        %v471 = vld [vmem:[#allocation7 + $0x118] sm:$0xff]
        %v472 = vld [vmem:[#allocation7 + $0x120] sm:$0xff]
        %v473 = vld [vmem:[#allocation7 + $0x128] sm:$0xff]
        %v474 = vld [vmem:[#allocation7 + $0x130] sm:$0xff]
        %v475 = vld [vmem:[#allocation7 + $0x138] sm:$0xff]
        %v476 = vld [vmem:[#allocation7 + $0x140] sm:$0xff]
        %v477 = vld [vmem:[#allocation7 + $0x148] sm:$0xff]
        %v478 = vld [vmem:[#allocation7 + $0x150] sm:$0xff]
        %v479 = vld [vmem:[#allocation7 + $0x158] sm:$0xff]
        %v480 = vld [vmem:[#allocation7 + $0x160] sm:$0xff]
        %v481 = vld [vmem:[#allocation7 + $0x168] sm:$0xff]
        %v482 = vld [vmem:[#allocation7 + $0x170] sm:$0xff]
        %v483 = vld [vmem:[#allocation7 + $0x178] sm:$0xff]
        %v484 = vld [vmem:[#allocation7 + $0x180] sm:$0xff]
        %v485 = vld [vmem:[#allocation7 + $0x188] sm:$0xff]
        %v486 = vld [vmem:[#allocation7 + $0x190] sm:$0xff]
        %v487 = vld [vmem:[#allocation7 + $0x198] sm:$0xff]
        %v488 = vld [vmem:[#allocation7 + $0x1a0] sm:$0xff]
        %v489 = vld [vmem:[#allocation7 + $0x1a8] sm:$0xff]
        %v490 = vld [vmem:[#allocation7 + $0x1b0] sm:$0xff]
        %v491 = vld [vmem:[#allocation7 + $0x1b8] sm:$0xff]
        %v492 = vld [vmem:[#allocation7 + $0x1c0] sm:$0xff]
        %v493 = vld [vmem:[#allocation7 + $0x1c8] sm:$0xff]
        %v494 = vld [vmem:[#allocation7 + $0x1d0] sm:$0xff]
        %v495 = vld [vmem:[#allocation7 + $0x1d8] sm:$0xff]
        %v496 = vld [vmem:[#allocation7 + $0x1e0] sm:$0xff]
        %v497 = vld [vmem:[#allocation7 + $0x1e8] sm:$0xff]
        %v498 = vld [vmem:[#allocation7 + $0x1f0] sm:$0xff]
        %v499 = vld [vmem:[#allocation7 + $0x1f8] sm:$0xff]
        %500 = vmatprep.subr.mxu0 %v437
        %501 = vmatpush1.msra.mxu0 %v436
        %502 = vmatprep.subr.mxu0 %v439
        %503 = vmatpush1.msra.mxu0 %v438
        %504 = vmatprep.subr.mxu0 %v441
        %505 = vmatpush1.msra.mxu0 %v440
        %506 = vmatprep.subr.mxu0 %v443
        %507 = vmatpush1.msra.mxu0 %v442
        %508 = vmatprep.subr.mxu0 %v445
        %509 = vmatpush1.msra.mxu0 %v444
        %510 = vmatprep.subr.mxu0 %v447
        %511 = vmatpush1.msra.mxu0 %v446
        %512 = vmatprep.subr.mxu0 %v449
        %513 = vmatpush1.msra.mxu0 %v448
        %514 = vmatprep.subr.mxu0 %v451
        %515 = vmatpush1.msra.mxu0 %v450
        %516 = vmatprep.subr.mxu0 %v453
        %517 = vmatpush1.msra.mxu0 %v452
        %518 = vmatprep.subr.mxu0 %v455
        %519 = vmatpush1.msra.mxu0 %v454
        %520 = vmatprep.subr.mxu0 %v457
        %521 = vmatpush1.msra.mxu0 %v456
        %522 = vmatprep.subr.mxu0 %v459
        %523 = vmatpush1.msra.mxu0 %v458
        %524 = vmatprep.subr.mxu0 %v461
        %525 = vmatpush1.msra.mxu0 %v460
        %526 = vmatprep.subr.mxu0 %v463
        %527 = vmatpush1.msra.mxu0 %v462
        %528 = vmatprep.subr.mxu0 %v465
        %529 = vmatpush1.msra.mxu0 %v464
        %530 = vmatprep.subr.mxu0 %v467
        %531 = vmatpush1.msra.mxu0 %v466
        %532 = vmatprep.subr.mxu0 %v469
        %533 = vmatpush1.msra.mxu0 %v468
        %534 = vmatprep.subr.mxu0 %v471
        %535 = vmatpush1.msra.mxu0 %v470
        %536 = vmatprep.subr.mxu0 %v473
        %537 = vmatpush1.msra.mxu0 %v472
        %538 = vmatprep.subr.mxu0 %v475
        %539 = vmatpush1.msra.mxu0 %v474
        %540 = vmatprep.subr.mxu0 %v477
        %541 = vmatpush1.msra.mxu0 %v476
        %542 = vmatprep.subr.mxu0 %v479
        %543 = vmatpush1.msra.mxu0 %v478
        %544 = vmatprep.subr.mxu0 %v481
        %545 = vmatpush1.msra.mxu0 %v480
        %546 = vmatprep.subr.mxu0 %v483
        %547 = vmatpush1.msra.mxu0 %v482
        %548 = vmatprep.subr.mxu0 %v485
        %549 = vmatpush1.msra.mxu0 %v484
        %550 = vmatprep.subr.mxu0 %v487
        %551 = vmatpush1.msra.mxu0 %v486
        %552 = vmatprep.subr.mxu0 %v489
        %553 = vmatpush1.msra.mxu0 %v488
        %554 = vmatprep.subr.mxu0 %v491
        %555 = vmatpush1.msra.mxu0 %v490
        %556 = vmatprep.subr.mxu0 %v493
        %557 = vmatpush1.msra.mxu0 %v492
        %558 = vmatprep.subr.mxu0 %v495
        %559 = vmatpush1.msra.mxu0 %v494
        %560 = vmatprep.subr.mxu0 %v497
        %561 = vmatpush1.msra.mxu0 %v496
        %562 = vmatprep.subr.mxu0 %v499
        %563 = vmatpush1.msra.mxu0 %v498
        %564 = vmatprep.mubr.f32.mxu0 %v435
        %565 = vmatmul.mubr.f32.gmra.mrb[0].mxu0 %v434
        %v566 = vpop.f32.mrb[0].mxu0
        %v567 = vadd.f32 0.0, %v566
        %v568 = vpop.f32.mrb[0].mxu0
        %v569 = vadd.f32 0.0, %v568
        %570 = vdwg.mxu0
        %v571 = vmax.f32 %v567, %v569
        %572 = vmax.xlane.f32.xlu0 %v571
        %v573 = vpop.xlane.xlu0 %572
        %v574 = vsub.f32 %v567, %v573
        %v575 = vsub.f32 %v569, %v573
        %v576 = vmul.f32 %v574, 1.442695
        %v577 = vpow.pop %v576
        %v578 = vmul.f32 %v575, 1.442695
        %v579 = vpow.pop %v578
        %v580 = vadd.f32 %v577, %v579
        %581 = vadd.xlane.f32.xlu0 %v580
        %v582 = vpop.xlane.xlu0 %581
        %v583 = vmul.f32 %v582, 0.03125
        %v584 = vrcp.pop %v583
        %v585 = vmul.f32 1.0, %v584
        %v586 = vmul.f32 %v577, %v585
        %v587 = vmul.f32 %v579, %v585
        %v588 = vld [vmem:[#allocation8] sm:$0xff]
        %v589 = vld [vmem:[#allocation8 + $0x8] sm:$0xff]
        %v590 = vld [vmem:[#allocation8 + $0x10] sm:$0xff]
        %v591 = vld [vmem:[#allocation8 + $0x18] sm:$0xff]
        %v592 = vld [vmem:[#allocation8 + $0x20] sm:$0xff]
        %v593 = vld [vmem:[#allocation8 + $0x28] sm:$0xff]
        %v594 = vld [vmem:[#allocation8 + $0x30] sm:$0xff]
        %v595 = vld [vmem:[#allocation8 + $0x38] sm:$0xff]
        %v596 = vld [vmem:[#allocation8 + $0x40] sm:$0xff]
        %v597 = vld [vmem:[#allocation8 + $0x48] sm:$0xff]
        %v598 = vld [vmem:[#allocation8 + $0x50] sm:$0xff]
        %v599 = vld [vmem:[#allocation8 + $0x58] sm:$0xff]
        %v600 = vld [vmem:[#allocation8 + $0x60] sm:$0xff]
        %v601 = vld [vmem:[#allocation8 + $0x68] sm:$0xff]
        %v602 = vld [vmem:[#allocation8 + $0x70] sm:$0xff]
        %v603 = vld [vmem:[#allocation8 + $0x78] sm:$0xff]
        %v604 = vld [vmem:[#allocation8 + $0x80] sm:$0xff]
        %v605 = vld [vmem:[#allocation8 + $0x88] sm:$0xff]
        %v606 = vld [vmem:[#allocation8 + $0x90] sm:$0xff]
        %v607 = vld [vmem:[#allocation8 + $0x98] sm:$0xff]
        %v608 = vld [vmem:[#allocation8 + $0xa0] sm:$0xff]
        %v609 = vld [vmem:[#allocation8 + $0xa8] sm:$0xff]
        %v610 = vld [vmem:[#allocation8 + $0xb0] sm:$0xff]
        %v611 = vld [vmem:[#allocation8 + $0xb8] sm:$0xff]
        %v612 = vld [vmem:[#allocation8 + $0xc0] sm:$0xff]
        %v613 = vld [vmem:[#allocation8 + $0xc8] sm:$0xff]
        %v614 = vld [vmem:[#allocation8 + $0xd0] sm:$0xff]
        %v615 = vld [vmem:[#allocation8 + $0xd8] sm:$0xff]
        %v616 = vld [vmem:[#allocation8 + $0xe0] sm:$0xff]
        %v617 = vld [vmem:[#allocation8 + $0xe8] sm:$0xff]
        %v618 = vld [vmem:[#allocation8 + $0xf0] sm:$0xff]
        %v619 = vld [vmem:[#allocation8 + $0xf8] sm:$0xff]
        %v620 = vld [vmem:[#allocation8 + $0x100] sm:$0xff]
        %v621 = vld [vmem:[#allocation8 + $0x108] sm:$0xff]
        %v622 = vld [vmem:[#allocation8 + $0x110] sm:$0xff]
        %v623 = vld [vmem:[#allocation8 + $0x118] sm:$0xff]
        %v624 = vld [vmem:[#allocation8 + $0x120] sm:$0xff]
        %v625 = vld [vmem:[#allocation8 + $0x128] sm:$0xff]
        %v626 = vld [vmem:[#allocation8 + $0x130] sm:$0xff]
        %v627 = vld [vmem:[#allocation8 + $0x138] sm:$0xff]
        %v628 = vld [vmem:[#allocation8 + $0x140] sm:$0xff]
        %v629 = vld [vmem:[#allocation8 + $0x148] sm:$0xff]
        %v630 = vld [vmem:[#allocation8 + $0x150] sm:$0xff]
        %v631 = vld [vmem:[#allocation8 + $0x158] sm:$0xff]
        %v632 = vld [vmem:[#allocation8 + $0x160] sm:$0xff]
        %v633 = vld [vmem:[#allocation8 + $0x168] sm:$0xff]
        %v634 = vld [vmem:[#allocation8 + $0x170] sm:$0xff]
        %v635 = vld [vmem:[#allocation8 + $0x178] sm:$0xff]
        %v636 = vld [vmem:[#allocation8 + $0x180] sm:$0xff]
        %v637 = vld [vmem:[#allocation8 + $0x188] sm:$0xff]
        %v638 = vld [vmem:[#allocation8 + $0x190] sm:$0xff]
        %v639 = vld [vmem:[#allocation8 + $0x198] sm:$0xff]
        %v640 = vld [vmem:[#allocation8 + $0x1a0] sm:$0xff]
        %v641 = vld [vmem:[#allocation8 + $0x1a8] sm:$0xff]
        %v642 = vld [vmem:[#allocation8 + $0x1b0] sm:$0xff]
        %v643 = vld [vmem:[#allocation8 + $0x1b8] sm:$0xff]
        %v644 = vld [vmem:[#allocation8 + $0x1c0] sm:$0xff]
        %v645 = vld [vmem:[#allocation8 + $0x1c8] sm:$0xff]
        %v646 = vld [vmem:[#allocation8 + $0x1d0] sm:$0xff]
        %v647 = vld [vmem:[#allocation8 + $0x1d8] sm:$0xff]
        %v648 = vld [vmem:[#allocation8 + $0x1e0] sm:$0xff]
        %v649 = vld [vmem:[#allocation8 + $0x1e8] sm:$0xff]
        %v650 = vld [vmem:[#allocation8 + $0x1f0] sm:$0xff]
        %v651 = vld [vmem:[#allocation8 + $0x1f8] sm:$0xff]
        %652 = vmatprep.subr.mxu0 %v589
        %653 = vmatpush1.msra.mxu0 %v588
        %654 = vmatprep.subr.mxu0 %v591
        %655 = vmatpush1.msra.mxu0 %v590
        %656 = vmatprep.subr.mxu0 %v593
        %657 = vmatpush1.msra.mxu0 %v592
        %658 = vmatprep.subr.mxu0 %v595
        %659 = vmatpush1.msra.mxu0 %v594
        %660 = vmatprep.subr.mxu0 %v597
        %661 = vmatpush1.msra.mxu0 %v596
        %662 = vmatprep.subr.mxu0 %v599
        %663 = vmatpush1.msra.mxu0 %v598
        %664 = vmatprep.subr.mxu0 %v601
        %665 = vmatpush1.msra.mxu0 %v600
        %666 = vmatprep.subr.mxu0 %v603
        %667 = vmatpush1.msra.mxu0 %v602
        %668 = vmatprep.subr.mxu0 %v605
        %669 = vmatpush1.msra.mxu0 %v604
        %670 = vmatprep.subr.mxu0 %v607
        %671 = vmatpush1.msra.mxu0 %v606
        %672 = vmatprep.subr.mxu0 %v609
        %673 = vmatpush1.msra.mxu0 %v608
        %674 = vmatprep.subr.mxu0 %v611
        %675 = vmatpush1.msra.mxu0 %v610
        %676 = vmatprep.subr.mxu0 %v613
        %677 = vmatpush1.msra.mxu0 %v612
        %678 = vmatprep.subr.mxu0 %v615
        %679 = vmatpush1.msra.mxu0 %v614
        %680 = vmatprep.subr.mxu0 %v617
        %681 = vmatpush1.msra.mxu0 %v616
        %682 = vmatprep.subr.mxu0 %v619
        %683 = vmatpush1.msra.mxu0 %v618
        %684 = vmatprep.subr.mxu0 %v621
        %685 = vmatpush1.msra.mxu0 %v620
        %686 = vmatprep.subr.mxu0 %v623
        %687 = vmatpush1.msra.mxu0 %v622
        %688 = vmatprep.subr.mxu0 %v625
        %689 = vmatpush1.msra.mxu0 %v624
        %690 = vmatprep.subr.mxu0 %v627
        %691 = vmatpush1.msra.mxu0 %v626
        %692 = vmatprep.subr.mxu0 %v629
        %693 = vmatpush1.msra.mxu0 %v628
        %694 = vmatprep.subr.mxu0 %v631
        %695 = vmatpush1.msra.mxu0 %v630
        %696 = vmatprep.subr.mxu0 %v633
        %697 = vmatpush1.msra.mxu0 %v632
        %698 = vmatprep.subr.mxu0 %v635
        %699 = vmatpush1.msra.mxu0 %v634
        %700 = vmatprep.subr.mxu0 %v637
        %701 = vmatpush1.msra.mxu0 %v636
        %702 = vmatprep.subr.mxu0 %v639
        %703 = vmatpush1.msra.mxu0 %v638
        %704 = vmatprep.subr.mxu0 %v641
        %705 = vmatpush1.msra.mxu0 %v640
        %706 = vmatprep.subr.mxu0 %v643
        %707 = vmatpush1.msra.mxu0 %v642
        %708 = vmatprep.subr.mxu0 %v645
        %709 = vmatpush1.msra.mxu0 %v644
        %710 = vmatprep.subr.mxu0 %v647
        %711 = vmatpush1.msra.mxu0 %v646
        %712 = vmatprep.subr.mxu0 %v649
        %713 = vmatpush1.msra.mxu0 %v648
        %714 = vmatprep.subr.mxu0 %v651
        %715 = vmatpush1.msra.mxu0 %v650
        %716 = vmatprep.mubr.f32.mxu0 %v350
        %717 = vmatmul.mubr.f32.gmra.mrb[0].mxu0 %v349
        %v718 = vpop.f32.mrb[0].mxu0
        %v719 = vadd.f32 0.0, %v718
        %v720 = vpop.f32.mrb[0].mxu0
        %v721 = vadd.f32 0.0, %v720
        %722 = vdwg.mxu0
        %v723 = vmul.f32 %v586, %v719
        %v724 = vmul.f32 %v587, %v721
        %725 = vst [vmem:[%s284] sm:$0xff] %v723
        %726 = vst [vmem:[%s284 + $0x8] sm:$0xff] %v724
        %s727 = sand.u32 %s142, 1
        %s728 = scalar_lea.sflag [#allocation4], %s727
        %s729 = sand.u32 %s142, 1
        %s730 = smul.addr %s729, 16
        %s731 = scalar_lea.vmem [#allocation10], %s730
        // Predicated region
        $region57: #{_pooled_call.1} parent=39 // pred_check
          %p732 = pneg %p152
        $region58: #{_pooled_call.1} parent=39 // pred_check_branch
          %734 = sbr.rel (%p732) target = $region60
        $region59: #{_pooled_call.1} parent=39 // pred_region
          %s736 = ssub.s32 256, 256
          %737 = vsyncadd %s728, %s736
          %s738 = smul.addr %s24, 2
          %s739 = smul.addr %s738, 128
          %s740 = scalar_lea.hbm %s5, %s739
          %s742 = sshll.u32 %s731, 4
          %s743 = int_to_ptr.vmem [resolvable:$true] %s742
          %745 = dma.vmem_to_hbm [thread:$0]  %s743, 256, %s740, %s728
        $region60: #{_pooled_call.1} parent=39 // pred_fallthru
          _
      $region40: #{_pooled_call.1} parent=5 // pred_fallthru
        _
      %p746 = scmp.le.s32.totalorder 2, %s19
      // Predicated region
      $region61: #{_pooled_call.1} parent=5 // pred_check
        %p747 = pneg %p746
      $region62: #{_pooled_call.1} parent=5 // pred_check_branch
        %749 = sbr.rel (%p747) target = $region64
      $region63: #{_pooled_call.1} parent=5 // pred_region
        %s750 = ssub.s32 %s19, 2
        // Predicated region
        $region65: #{_pooled_call.1} parent=63 // pred_check
          %p751 = pneg %p158
        $region66: #{_pooled_call.1} parent=63 // pred_check_branch
          %753 = sbr.rel (%p751) target = $region68
        $region67: #{_pooled_call.1} parent=63 // pred_region
          %s754 = sand.u32 %s143, 1
          %s755 = scalar_lea.sflag [#allocation4], %s754
          %s756 = sand.u32 %s143, 1
          %s757 = smul.addr %s756, 16
          %s758 = scalar_lea.vmem [#allocation10], %s757
          %759 = dma.done %s755, 256
        $region68: #{_pooled_call.1} parent=63 // pred_fallthru
          _
      $region64: #{_pooled_call.1} parent=5 // pred_fallthru
        _
    $region6: #{_pooled_call.1} parent=1 // loop_footer
      %s23 = sadd.s32 1, %s19
    $region7: #{_pooled_call.1} parent=1 // loop_footer_branch
      %18 = sbr.rel target = $region3
    $region8: #{_pooled_call.1} parent=1 // loop_exit
      _
    %760 = vsyncpa [#allocation3], 1
    %s761 = scalar_lea.sflag [#allocation3], 1
    %762 = vsyncpa %s761, 1
    %763 = vsyncpa [#allocation6], 1
    %764 = vsyncpa [#allocation9], 1
    %765 = vsyncpa [#allocation4], 1
    %s766 = scalar_lea.sflag [#allocation4], 1
    %767 = vsyncpa %s766, 1

</llo_original>
